<compile_context>
chip_gen: v7x
topology: tpu7x:2x2x1
jax: 0.10.0
libtpu: 0.0.40
codegen_flags: <defaults>
</compile_context>

<pallas_src>
import jax
import jax.numpy as jnp
import numpy as np
from jax import lax
from jax.experimental import pallas as pl
from jax.experimental.pallas import tpu as pltpu

MAX_TILE_ROWS = 4096            # (4096, 128) f32 tile = 2 MiB per input per buffer
_VMEM_LIMIT = 48 * 1024 * 1024  # headroom for big tiles; < v7x physical VMEM


def _make_epilogue(n_elems):
    """Scalar epilogue: shifted raw moments -> loss (matches torch forward)."""
    n_f = float(n_elems)

    def epilogue(sy, syp, s_a, s_b, s_aa, s_bb, s_ab, out_ref):
        eps = jnp.float32(1e-7)
        n = jnp.float32(n_f)
        dmy = s_a / n            # mean of shifted y
        dmyp = s_b / n           # mean of shifted yp
        my = sy + dmy
        myp = syp + dmyp
        denom = n - 1.0          # same single-element hazard as the torch ref
        s2y = (s_aa - n * dmy * dmy) / denom
        s2yp = (s_bb - n * dmyp * dmyp) / denom
        syyp = (s_ab - n * dmy * dmyp) / denom
        # l(syyp + eps) = log(max(eps, syyp + 2*eps))
        l_syyp = jnp.log(jnp.maximum(eps, syyp + 2.0 * eps))
        big_s = l_syyp - 0.5 * (jnp.log(s2y + eps) + jnp.log(s2yp + eps))
        out_ref[0, 0] = -big_s + 0.03 * jnp.abs(my - myp)

    return epilogue


def _make_mask(rows, tile_rows, tail_lanes):
    """Zero out padded lanes / out-of-range rows of a (tile_rows, 128) tile."""
    def mask(t, a, b):
        row = t * tile_rows + lax.broadcasted_iota(jnp.int32, (tile_rows, 128), 0)
        lane = lax.broadcasted_iota(jnp.int32, (tile_rows, 128), 1)
        valid = (row < rows - 1) | ((row == rows - 1) & (lane < tail_lanes))
        return jnp.where(valid, a, 0.0), jnp.where(valid, b, 0.0)

    return mask


def _make_single_tile_kernel(n_elems, rows, tile_rows, ragged):
    """Whole problem fits one tile: no accumulators, direct sums + epilogue."""
    epilogue = _make_epilogue(n_elems)
    tail_lanes = n_elems - (rows - 1) * 128
    mask = _make_mask(rows, tile_rows, tail_lanes)

    def kernel(shift_ref, y_ref, yp_ref, out_ref):
        sy = shift_ref[0]        # shift = first element of y  (f32, SMEM)
        syp = shift_ref[1]       # shift = first element of yp (f32, SMEM)
        ys = y_ref[...].astype(jnp.float32) - sy
        yps = yp_ref[...].astype(jnp.float32) - syp
        if ragged:
            ys, yps = mask(0, ys, yps)
        epilogue(sy, syp,
                 jnp.sum(ys), jnp.sum(yps),
                 jnp.sum(ys * ys), jnp.sum(yps * yps), jnp.sum(ys * yps),
                 out_ref)

    return kernel


def _make_streaming_kernel(n_elems, rows, tile_rows, ragged):
    """Multi-tile streaming pass with vreg-sized (8,128) accumulators."""
    assert tile_rows % 8 == 0
    epilogue = _make_epilogue(n_elems)
    tail_lanes = n_elems - (rows - 1) * 128
    mask = _make_mask(rows, tile_rows, tail_lanes)
    chunks = tile_rows // 8

    def kernel(shift_ref, y_ref, yp_ref, out_ref,
               acc_y, acc_yp, acc_yy, acc_ypyp, acc_yyp):
        t = pl.program_id(0)
        nt = pl.num_programs(0)

        @pl.when(t == 0)
        def _init():
            acc_y[...] = jnp.zeros_like(acc_y)
            acc_yp[...] = jnp.zeros_like(acc_yp)
            acc_yy[...] = jnp.zeros_like(acc_yy)
            acc_ypyp[...] = jnp.zeros_like(acc_ypyp)
            acc_yyp[...] = jnp.zeros_like(acc_yyp)

        sy = shift_ref[0]
        syp = shift_ref[1]
        ys = y_ref[...].astype(jnp.float32) - sy
        yps = yp_ref[...].astype(jnp.float32) - syp

        def accumulate(a, b):
            # Partial-reduce in registers; one (8,128) RMW per moment per step.
            acc_y[...] += a.reshape(chunks, 8, 128).sum(axis=0)
            acc_yp[...] += b.reshape(chunks, 8, 128).sum(axis=0)
            acc_yy[...] += (a * a).reshape(chunks, 8, 128).sum(axis=0)
            acc_ypyp[...] += (b * b).reshape(chunks, 8, 128).sum(axis=0)
            acc_yyp[...] += (a * b).reshape(chunks, 8, 128).sum(axis=0)

        if ragged:
            # Only the last tile can contain padded lanes / OOB rows: pay the
            # iota/compare/select mask there and nowhere else.
            @pl.when(t != nt - 1)
            def _full():
                accumulate(ys, yps)

            @pl.when(t == nt - 1)
            def _tail():
                a, b = mask(t, ys, yps)
                accumulate(a, b)
        else:
            accumulate(ys, yps)

        @pl.when(t == nt - 1)
        def _finish():
            epilogue(sy, syp,
                     jnp.sum(acc_y[...]), jnp.sum(acc_yp[...]),
                     jnp.sum(acc_yy[...]), jnp.sum(acc_ypyp[...]),
                     jnp.sum(acc_yyp[...]), out_ref)

    return kernel


def correlation_with_mean_loss(y, yp, max_tile_rows=MAX_TILE_ROWS):
    """Pallas TPU implementation of CorrelationWithMeanLoss.forward."""
    yf = jnp.ravel(y)
    ypf = jnp.ravel(yp)
    n = yf.shape[0]
    if n < 2:
        raise ValueError("CorrelationWithMeanLoss needs >= 2 elements "
                         "(unbiased covariance divides by N-1).")

    # Shift constants (first elements), delivered to the kernel via SMEM.
    # Shifting avoids catastrophic cancellation in the raw-moment form.
    shifts = jnp.stack([yf[0], ypf[0]]).astype(jnp.float32)

    # Pad only up to the lane width (needed for the (rows, 128) reshape).
    lane_pad = (-n) % 128
    if lane_pad:
        yf = jnp.pad(yf, (0, lane_pad))
        ypf = jnp.pad(ypf, (0, lane_pad))
    rows = (n + lane_pad) // 128

    # Tile rows must be a multiple of 8 for the (8,128) partial reduction.
    max_tile_rows = max(8, (int(max_tile_rows) // 8) * 8)

    if rows <= max_tile_rows:
        tile_rows = rows                 # block == full array: no (8,128) constraint
        num_tiles = 1
        ragged = lane_pad != 0
        kernel = _make_single_tile_kernel(n, rows, tile_rows, ragged)
        scratch = []
    else:
        tile_rows = max_tile_rows
        num_tiles = pl.cdiv(rows, tile_rows)
        # Invariant: any OOB rows of the last block are garbage and MUST be
        # masked, so ragged is True whenever rows % tile_rows != 0.
        ragged = (rows % tile_rows != 0) or (lane_pad != 0)
        kernel = _make_streaming_kernel(n, rows, tile_rows, ragged)
        scratch = [pltpu.VMEM((8, 128), jnp.float32)] * 5

    y2 = yf.reshape(rows, 128)
    yp2 = ypf.reshape(rows, 128)

    tile_spec = pl.BlockSpec((tile_rows, 128), lambda t: (t, 0))
    smem_spec = pl.BlockSpec(memory_space=pltpu.MemorySpace.SMEM)

    out = pl.pallas_call(
        kernel,
        out_shape=jax.ShapeDtypeStruct((1, 1), jnp.float32),
        grid_spec=pltpu.PrefetchScalarGridSpec(
            num_scalar_prefetch=0,
            grid=(num_tiles,),
            in_specs=[smem_spec, tile_spec, tile_spec],
            out_specs=pl.BlockSpec(memory_space=pltpu.MemorySpace.SMEM),
            scratch_shapes=scratch,
        ),
        compiler_params=pltpu.CompilerParams(
            dimension_semantics=("arbitrary",),
            vmem_limit_bytes=_VMEM_LIMIT),
    )(shifts, y2, yp2)
    return out[0, 0]


def _reference_loss(y, yp):
    """Pure-JAX reference of the PyTorch forward (correctness check)."""
    eps = jnp.float32(1e-7)
    y = jnp.ravel(y).astype(jnp.float32)
    yp = jnp.ravel(yp).astype(jnp.float32)
    n = y.shape[0]
    my = jnp.mean(y)
    myp = jnp.mean(yp)
    dy = y - my
    dyp = yp - myp
    s2y = jnp.sum(dy * dy) / (n - 1)
    s2yp = jnp.sum(dyp * dyp) / (n - 1)
    syyp = jnp.sum(dy * dyp) / (n - 1)
    S = (jnp.log(jnp.maximum(eps, syyp + 2.0 * eps))
         - 0.5 * (jnp.log(s2y + eps) + jnp.log(s2yp + eps)))
    return -S + 0.03 * jnp.abs(my - myp)


def _check(loss, ref):
    assert np.allclose(np.asarray(loss), np.asarray(ref),
                       rtol=1e-4, atol=1e-5), (loss, ref)


if __name__ == "__main__":
    key = jax.random.PRNGKey(0)
    ky, kyp, kz = jax.random.split(key, 3)

    # 1) Primary small case (module flattens anyway): single-tile path, n=2048.
    y = jax.random.normal(ky, (2, 4, 16, 16), dtype=jnp.float32) * 0.5 + 1.0
    yp = y + 0.1 * jax.random.normal(kyp, (2, 4, 16, 16), dtype=jnp.float32)
    loss = jax.block_until_ready(correlation_with_mean_loss(y, yp))
    ref = jax.block_until_ready(_reference_loss(y, yp))
    _check(loss, ref)

    # Larger input used to exercise the streaming/accumulator paths.
    y2 = jax.random.normal(kz, (4, 4, 96, 96), dtype=jnp.float32) * 2.0 + 3.0
    yp2 = y2 + 0.25 * jax.random.normal(kyp, (4, 4, 96, 96), dtype=jnp.float32)
    ref2 = jax.block_until_ready(_reference_loss(y2, yp2))

    # 2) Default tiling: rows=1152 <= 4096 -> single large tile.
    loss2 = jax.block_until_ready(correlation_with_mean_loss(y2, yp2))
    _check(loss2, ref2)

    # 3) Multi-tile streaming, exact tiling (no mask emitted): 1152 / 128 = 9 tiles.
    loss3 = jax.block_until_ready(
        correlation_with_mean_loss(y2, yp2, max_tile_rows=128))
    _check(loss3, ref2)

    # 4) Multi-tile streaming, ragged last tile (OOB rows masked): 5 tiles of 256.
    loss4 = jax.block_until_ready(
        correlation_with_mean_loss(y2, yp2, max_tile_rows=256))
    _check(loss4, ref2)

    # 5) Lane-ragged tiny case: n=105 (not a multiple of 128), single tile.
    y5 = jax.random.normal(ky, (3, 5, 7), dtype=jnp.float32) * 0.3 + 2.0
    yp5 = y5 + 0.05 * jax.random.normal(kz, (3, 5, 7), dtype=jnp.float32)
    loss5 = jax.block_until_ready(correlation_with_mean_loss(y5, yp5))
    ref5 = jax.block_until_ready(_reference_loss(y5, yp5))
    _check(loss5, ref5)

    print("KERNEL_OK")
</pallas_src>

<mosaic_0001>
module attributes {stable_mosaic.version = 11 : i64} {
  func.func @kernel(%arg0: i32, %arg1: memref<2xf32, #tpu.memory_space<smem>>, %arg2: memref<16x128xf32, #tpu.memory_space<vmem>>, %arg3: memref<16x128xf32, #tpu.memory_space<vmem>>, %arg4: memref<1x1xf32, #tpu.memory_space<smem>>) attributes {dimension_semantics = [#tpu.dimension_semantics<arbitrary>], iteration_bounds = array<i64: 1>, scalar_prefetch = 0 : i64, scratch_operands = 0 : i64, tpu.core_type = #tpu.core_type<tc>, window_params = [{transform_indices = @transform_0, window_bounds = array<i64: 2>}, {transform_indices = @transform_1, window_bounds = array<i64: 16, 128>}, {transform_indices = @transform_2, window_bounds = array<i64: 16, 128>}, {transform_indices = @transform_3, window_bounds = array<i64: 1, 1>}]} {
    %c0 = arith.constant 0 : index
    %0 = memref.load %arg1[%c0] : memref<2xf32, #tpu.memory_space<smem>>
    %c1 = arith.constant 1 : index
    %1 = memref.load %arg1[%c1] : memref<2xf32, #tpu.memory_space<smem>>
    %c0_0 = arith.constant 0 : index
    %c0_1 = arith.constant 0 : index
    %2 = vector.load %arg2[%c0_0, %c0_1] : memref<16x128xf32, #tpu.memory_space<vmem>>, vector<16x128xf32>
    %3 = vector.broadcast %0 : f32 to vector<16x128xf32>
    %4 = arith.subf %2, %3 : vector<16x128xf32>
    %c0_2 = arith.constant 0 : index
    %c0_3 = arith.constant 0 : index
    %5 = vector.load %arg3[%c0_2, %c0_3] : memref<16x128xf32, #tpu.memory_space<vmem>>, vector<16x128xf32>
    %6 = vector.broadcast %1 : f32 to vector<16x128xf32>
    %7 = arith.subf %5, %6 : vector<16x128xf32>
    %8 = vector.shape_cast %4 : vector<16x128xf32> to vector<1x16x128xf32>
    %cst = arith.constant dense<0.000000e+00> : vector<1xf32>
    %9 = vector.multi_reduction <add>, %8, %cst [1, 2] : vector<1x16x128xf32> to vector<1xf32>
    %10 = vector.shape_cast %9 : vector<1xf32> to vector<1x1x1xf32>
    %11 = vector.extract %10[0, 0, 0] : f32 from vector<1x1x1xf32>
    %12 = vector.shape_cast %7 : vector<16x128xf32> to vector<1x16x128xf32>
    %cst_4 = arith.constant dense<0.000000e+00> : vector<1xf32>
    %13 = vector.multi_reduction <add>, %12, %cst_4 [1, 2] : vector<1x16x128xf32> to vector<1xf32>
    %14 = vector.shape_cast %13 : vector<1xf32> to vector<1x1x1xf32>
    %15 = vector.extract %14[0, 0, 0] : f32 from vector<1x1x1xf32>
    %16 = arith.mulf %4, %4 : vector<16x128xf32>
    %17 = vector.shape_cast %16 : vector<16x128xf32> to vector<1x16x128xf32>
    %cst_5 = arith.constant dense<0.000000e+00> : vector<1xf32>
    %18 = vector.multi_reduction <add>, %17, %cst_5 [1, 2] : vector<1x16x128xf32> to vector<1xf32>
    %19 = vector.shape_cast %18 : vector<1xf32> to vector<1x1x1xf32>
    %20 = vector.extract %19[0, 0, 0] : f32 from vector<1x1x1xf32>
    %21 = arith.mulf %7, %7 : vector<16x128xf32>
    %22 = vector.shape_cast %21 : vector<16x128xf32> to vector<1x16x128xf32>
    %cst_6 = arith.constant dense<0.000000e+00> : vector<1xf32>
    %23 = vector.multi_reduction <add>, %22, %cst_6 [1, 2] : vector<1x16x128xf32> to vector<1xf32>
    %24 = vector.shape_cast %23 : vector<1xf32> to vector<1x1x1xf32>
    %25 = vector.extract %24[0, 0, 0] : f32 from vector<1x1x1xf32>
    %26 = arith.mulf %4, %7 : vector<16x128xf32>
    %27 = vector.shape_cast %26 : vector<16x128xf32> to vector<1x16x128xf32>
    %cst_7 = arith.constant dense<0.000000e+00> : vector<1xf32>
    %28 = vector.multi_reduction <add>, %27, %cst_7 [1, 2] : vector<1x16x128xf32> to vector<1xf32>
    %29 = vector.shape_cast %28 : vector<1xf32> to vector<1x1x1xf32>
    %30 = vector.extract %29[0, 0, 0] : f32 from vector<1x1x1xf32>
    %cst_8 = arith.constant 2.048000e+03 : f32
    %31 = arith.divf %11, %cst_8 : f32
    %cst_9 = arith.constant 2.048000e+03 : f32
    %32 = arith.divf %15, %cst_9 : f32
    %33 = arith.addf %0, %31 : f32
    %34 = arith.addf %1, %32 : f32
    %cst_10 = arith.constant 2.048000e+03 : f32
    %cst_11 = arith.constant 1.000000e+00 : f32
    %35 = arith.subf %cst_10, %cst_11 : f32
    %cst_12 = arith.constant 2.048000e+03 : f32
    %36 = arith.mulf %cst_12, %31 : f32
    %37 = arith.mulf %36, %31 : f32
    %38 = arith.subf %20, %37 : f32
    %39 = arith.divf %38, %35 : f32
    %cst_13 = arith.constant 2.048000e+03 : f32
    %40 = arith.mulf %cst_13, %32 : f32
    %41 = arith.mulf %40, %32 : f32
    %42 = arith.subf %25, %41 : f32
    %43 = arith.divf %42, %35 : f32
    %cst_14 = arith.constant 2.048000e+03 : f32
    %44 = arith.mulf %cst_14, %31 : f32
    %45 = arith.mulf %44, %32 : f32
    %46 = arith.subf %30, %45 : f32
    %47 = arith.divf %46, %35 : f32
    %cst_15 = arith.constant 2.000000e+00 : f32
    %cst_16 = arith.constant 1.000000e-07 : f32
    %48 = arith.mulf %cst_15, %cst_16 : f32
    %49 = arith.addf %47, %48 : f32
    %cst_17 = arith.constant 1.000000e-07 : f32
    %50 = arith.maximumf %cst_17, %49 : f32
    %51 = math.log %50 : f32
    %cst_18 = arith.constant 1.000000e-07 : f32
    %52 = arith.addf %39, %cst_18 : f32
    %53 = math.log %52 : f32
    %cst_19 = arith.constant 1.000000e-07 : f32
    %54 = arith.addf %43, %cst_19 : f32
    %55 = math.log %54 : f32
    %56 = arith.addf %53, %55 : f32
    %cst_20 = arith.constant 5.000000e-01 : f32
    %57 = arith.mulf %cst_20, %56 : f32
    %58 = arith.subf %51, %57 : f32
    %cst_21 = arith.constant 0.000000e+00 : f32
    %59 = arith.subf %cst_21, %58 : f32
    %60 = arith.subf %33, %34 : f32
    %61 = math.absf %60 : f32
    %cst_22 = arith.constant 3.000000e-02 : f32
    %62 = arith.mulf %cst_22, %61 : f32
    %63 = arith.addf %59, %62 : f32
    %c0_23 = arith.constant 0 : index
    %c0_24 = arith.constant 0 : index
    %64 = memref.load %arg4[%c0_23, %c0_24] : memref<1x1xf32, #tpu.memory_space<smem>>
    memref.store %63, %arg4[%c0_23, %c0_24] : memref<1x1xf32, #tpu.memory_space<smem>>
    return
  }
  func.func @transform_0(%arg0: i32) -> i32 {
    %c0_i32 = arith.constant 0 : i32
    %c0_i32_0 = arith.constant 0 : i32
    return %c0_i32 : i32
  }
  func.func @transform_1(%arg0: i32) -> (i32, i32) {
    %c0_i32 = arith.constant 0 : i32
    %c0_i32_0 = arith.constant 0 : i32
    return %arg0, %c0_i32 : i32, i32
  }
  func.func @transform_2(%arg0: i32) -> (i32, i32) {
    %c0_i32 = arith.constant 0 : i32
    %c0_i32_0 = arith.constant 0 : i32
    return %arg0, %c0_i32 : i32, i32
  }
  func.func @transform_3(%arg0: i32) -> (i32, i32) {
    %c0_i32 = arith.constant 0 : i32
    %c0_i32_0 = arith.constant 0 : i32
    %c0_i32_1 = arith.constant 0 : i32
    return %c0_i32, %c0_i32_0 : i32, i32
  }
}

</mosaic_0001>

<llo_original>
// kernel: tpu_custom_call.1
$region0: #{tpu_custom_call.1}
  #allocation0 [shape = 'u32[]', space=smem, size = 0x4, offset = 0x4, fixed_abs, tag = 'smem constant byte address 0x4 - core index']
  #allocation1 [shape = 'u32[144,128]{1,0:T(1,128)}', space=vmem, size = 0x12000, scoped, tag = 'internal scratch']
  %s0 = inlined_call_operand.hbm [shape: f32[2], index: 0, kind: input, shape index: {}]
  %s1 = inlined_call_operand.hbm [shape: f32[16,128], index: 1, kind: input, shape index: {}]
  %s2 = inlined_call_operand.hbm [shape: f32[16,128], index: 2, kind: input, shape index: {}]
  %s3 = inlined_call_operand.hbm [shape: f32[1,1], index: 3, kind: output, shape index: {}]
  %s4 = sld [smem:[#allocation0]]
  $region34: #{tpu_custom_call.1} parent=0
    _
  %s6 = ssub.s32 1, %s4
  %s7 = scalar_select 0, %s6, %s4
  $region1: #{tpu_custom_call.1} parent=0
    #allocation2 [shape = 'u8[512]{0}', space=smem, size = 0x200, scoped, tag = 'input window, operand 0, single buffered']
    #allocation3 [shape = 's32[1]{0}', space=sflag, size = 0x4, scoped, tag = 'scoped memory for tpu_custom_call.1']
    #allocation4 [shape = 's32[1]{0}', space=sflag, size = 0x4, scoped, tag = 'scoped memory for tpu_custom_call.1']
    #allocation5 [shape = 's32[1]{0}', space=sflag, size = 0x4, scoped, tag = 'scoped memory for tpu_custom_call.1']
    #allocation6 [shape = 'u8[8192]{0}', space=vmem, size = 0x2000, scoped, tag = 'input window, operand 1, single buffered']
    #allocation7 [shape = 'u8[8192]{0}', space=vmem, size = 0x2000, scoped, tag = 'input window, operand 2, single buffered']
    #allocation8 [shape = 's32[1]{0}', space=sflag, size = 0x4, scoped, tag = 'scoped memory for tpu_custom_call.1']
    #allocation9 [shape = 'u8[512]{0}', space=smem, size = 0x200, scoped, tag = 'output window, operand 0, single buffered']
    %8 = vsyncpa [#allocation4], 0
    %9 = vsyncpa [#allocation3], 0
    %10 = vsyncpa [#allocation8], 0
    %11 = vsyncpa [#allocation5], 0
    // Predicated region
    $region2: #{tpu_custom_call.1} parent=1 // pred_check
      _
    $region3: #{tpu_custom_call.1} parent=1 // pred_check_branch
      %13 = sbr.rel (0) target = $region5
    $region4: #{tpu_custom_call.1} parent=1 // pred_region
      %s15 = ssub.s32 16, 16
      %16 = vsyncadd [#allocation4], %s15
      %19 = dma.hbm_to_smem %s0, 16, [#allocation2], [#allocation4]
    $region5: #{tpu_custom_call.1} parent=1 // pred_fallthru
      _
    // Predicated region
    $region6: #{tpu_custom_call.1} parent=1 // pred_check
      _
    $region7: #{tpu_custom_call.1} parent=1 // pred_check_branch
      %21 = sbr.rel (0) target = $region9
    $region8: #{tpu_custom_call.1} parent=1 // pred_region
      %s23 = ssub.s32 256, 256
      %24 = vsyncadd [#allocation3], %s23
      %s25 = sshll.u32 [#allocation6], 4
      %s26 = int_to_ptr.vmem [resolvable:$true] %s25
      %31 = dma.hbm_to_vmem [thread:$0]  %s1, 256, %s26, [#allocation3], 128, 128, 8
    $region9: #{tpu_custom_call.1} parent=1 // pred_fallthru
      _
    // Predicated region
    $region10: #{tpu_custom_call.1} parent=1 // pred_check
      _
    $region11: #{tpu_custom_call.1} parent=1 // pred_check_branch
      %33 = sbr.rel (0) target = $region13
    $region12: #{tpu_custom_call.1} parent=1 // pred_region
      %s35 = ssub.s32 256, 256
      %36 = vsyncadd [#allocation8], %s35
      %s37 = sshll.u32 [#allocation7], 4
      %s38 = int_to_ptr.vmem [resolvable:$true] %s37
      %43 = dma.hbm_to_vmem [thread:$0]  %s2, 256, %s38, [#allocation8], 128, 128, 8
    $region13: #{tpu_custom_call.1} parent=1 // pred_fallthru
      _
    // Predicated region
    $region14: #{tpu_custom_call.1} parent=1 // pred_check
      _
    $region15: #{tpu_custom_call.1} parent=1 // pred_check_branch
      %45 = sbr.rel (0) target = $region17
    $region16: #{tpu_custom_call.1} parent=1 // pred_region
      %46 = dma.done [#allocation4], 16
    $region17: #{tpu_custom_call.1} parent=1 // pred_fallthru
      _
    // Predicated region
    $region18: #{tpu_custom_call.1} parent=1 // pred_check
      _
    $region19: #{tpu_custom_call.1} parent=1 // pred_check_branch
      %48 = sbr.rel (0) target = $region21
    $region20: #{tpu_custom_call.1} parent=1 // pred_region
      %49 = dma.done [#allocation3], 256
    $region21: #{tpu_custom_call.1} parent=1 // pred_fallthru
      _
    // Predicated region
    $region22: #{tpu_custom_call.1} parent=1 // pred_check
      _
    $region23: #{tpu_custom_call.1} parent=1 // pred_check_branch
      %51 = sbr.rel (0) target = $region25
    $region24: #{tpu_custom_call.1} parent=1 // pred_region
      %52 = dma.done [#allocation8], 256
    $region25: #{tpu_custom_call.1} parent=1 // pred_fallthru
      _
    %53 = sfence
    %s54 = sld [smem:[#allocation2]]
    %s55 = sld [smem:[#allocation2 + $0x1]]
    %v56 = vld [vmem:[#allocation6] sm:$0xff]
    %v57 = vld [vmem:[#allocation6 + $0x8] sm:$0xff]
    %v58 = vstv %s54
    %v59 = vsub.f32 %v56, %v58
    %v60 = vsub.f32 %v57, %v58
    %v61 = vld [vmem:[#allocation7] sm:$0xff]
    %v62 = vld [vmem:[#allocation7 + $0x8] sm:$0xff]
    %v63 = vstv %s55
    %v64 = vsub.f32 %v61, %v63
    %v65 = vsub.f32 %v62, %v63
    %v66 = vadd.f32 %v59, %v60
    %67 = vadd.xlane.f32.xlu0 %v66
    %v68 = vpop.xlane.xlu0 %67
    %v69 = vrot.slane %v68, 4
    %v70 = vadd.f32 %v68, %v69
    %v71 = vrot.slane %v70, 2
    %v72 = vadd.f32 %v70, %v71
    %v73 = vrot.slane %v72, 1
    %v74 = vadd.f32 %v72, %v73
    %s75 = vtos %v74
    %v76 = vadd.f32 %v64, %v65
    %77 = vadd.xlane.f32.xlu0 %v76
    %v78 = vpop.xlane.xlu0 %77
    %v79 = vrot.slane %v78, 4
    %v80 = vadd.f32 %v78, %v79
    %v81 = vrot.slane %v80, 2
    %v82 = vadd.f32 %v80, %v81
    %v83 = vrot.slane %v82, 1
    %v84 = vadd.f32 %v82, %v83
    %s85 = vtos %v84
    %v86 = vmul.f32 %v59, %v59
    %v87 = vmul.f32 %v60, %v60
    %v88 = vadd.f32 %v86, %v87
    %89 = vadd.xlane.f32.xlu0 %v88
    %v90 = vpop.xlane.xlu0 %89
    %v91 = vrot.slane %v90, 4
    %v92 = vadd.f32 %v90, %v91
    %v93 = vrot.slane %v92, 2
    %v94 = vadd.f32 %v92, %v93
    %v95 = vrot.slane %v94, 1
    %v96 = vadd.f32 %v94, %v95
    %s97 = vtos %v96
    %v98 = vmul.f32 %v64, %v64
    %v99 = vmul.f32 %v65, %v65
    %v100 = vadd.f32 %v98, %v99
    %101 = vadd.xlane.f32.xlu0 %v100
    %v102 = vpop.xlane.xlu0 %101
    %v103 = vrot.slane %v102, 4
    %v104 = vadd.f32 %v102, %v103
    %v105 = vrot.slane %v104, 2
    %v106 = vadd.f32 %v104, %v105
    %v107 = vrot.slane %v106, 1
    %v108 = vadd.f32 %v106, %v107
    %s109 = vtos %v108
    %v110 = vmul.f32 %v59, %v64
    %v111 = vmul.f32 %v60, %v65
    %v112 = vadd.f32 %v110, %v111
    %113 = vadd.xlane.f32.xlu0 %v112
    %v114 = vpop.xlane.xlu0 %113
    %v115 = vrot.slane %v114, 4
    %v116 = vadd.f32 %v114, %v115
    %v117 = vrot.slane %v116, 2
    %v118 = vadd.f32 %v116, %v117
    %v119 = vrot.slane %v118, 1
    %v120 = vadd.f32 %v118, %v119
    %s121 = vtos %v120
    %v122 = vrcp.pop 2048.0
    %s123 = vtos %v122
    %s124 = smul.f32 %s75, %s123
    %v125 = vrcp.pop 2048.0
    %s126 = vtos %v125
    %s127 = smul.f32 %s85, %s126
    %s128 = sadd.f32 %s54, %s124
    %s129 = sadd.f32 %s55, %s127
    %s130 = smul.f32 %s124, 2048.0
    %s131 = smul.f32 %s130, %s124
    %s132 = ssub.f32 %s97, %s131
    %v133 = vrcp.pop 2047.0
    %s134 = vtos %v133
    %s135 = smul.f32 %s132, %s134
    %s136 = smul.f32 %s127, 2048.0
    %s137 = smul.f32 %s136, %s127
    %s138 = ssub.f32 %s109, %s137
    %v139 = vrcp.pop 2047.0
    %s140 = vtos %v139
    %s141 = smul.f32 %s138, %s140
    %s142 = smul.f32 %s130, %s127
    %s143 = ssub.f32 %s121, %s142
    %v144 = vrcp.pop 2047.0
    %s145 = vtos %v144
    %s146 = smul.f32 %s143, %s145
    %s147 = sadd.f32 %s146, 2e-07
    %s148 = smax.f32 %s147, 1e-07
    %v149 = vstv %s148
    %v150 = vlog2.pop %v149
    %v151 = vmul.f32 %v150, 0.6931472
    %s152 = vtos %v151
    %s153 = sadd.f32 %s135, 1e-07
    %v154 = vstv %s153
    %v155 = vlog2.pop %v154
    %v156 = vmul.f32 %v155, 0.6931472
    %s157 = vtos %v156
    %s158 = sadd.f32 %s141, 1e-07
    %v159 = vstv %s158
    %v160 = vlog2.pop %v159
    %v161 = vmul.f32 %v160, 0.6931472
    %s162 = vtos %v161
    %s163 = sadd.f32 %s157, %s162
    %s164 = smul.f32 %s163, 0.5
    %s165 = ssub.f32 %s152, %s164
    %s166 = ssub.f32 0.0, %s165
    %s167 = ssub.f32 %s128, %s129
    %s168 = sand.u32 2147483647, %s167
    %s169 = smul.f32 %s168, 0.03
    %s170 = sadd.f32 %s166, %s169
    %s171 = scalar_lea.smem [#allocation9], 0
    %172 = sst [smem:[%s171]] %s170
    // Predicated region
    $region26: #{tpu_custom_call.1} parent=1 // pred_check
      _
    $region27: #{tpu_custom_call.1} parent=1 // pred_check_branch
      %174 = sbr.rel (0) target = $region29
    $region28: #{tpu_custom_call.1} parent=1 // pred_region
      %s176 = ssub.s32 16, 16
      %177 = vsyncadd [#allocation5], %s176
      %180 = dma.smem_to_hbm [#allocation9], 16, %s3, [#allocation5]
    $region29: #{tpu_custom_call.1} parent=1 // pred_fallthru
      _
    // Predicated region
    $region30: #{tpu_custom_call.1} parent=1 // pred_check
      _
    $region31: #{tpu_custom_call.1} parent=1 // pred_check_branch
      %182 = sbr.rel (0) target = $region33
    $region32: #{tpu_custom_call.1} parent=1 // pred_region
      %183 = dma.done [#allocation5], 16
    $region33: #{tpu_custom_call.1} parent=1 // pred_fallthru
      _
    %184 = sfence
    %185 = vsyncpa [#allocation3], 1
    %186 = vsyncpa [#allocation8], 1
    %187 = vsyncpa [#allocation4], 1
    %188 = vsyncpa [#allocation5], 1

</llo_original>
